<compile_context>
chip_gen: v5e
topology: v5e:2x2
jax: 0.10.0
libtpu: 0.0.40
codegen_flags: <defaults>
</compile_context>

<pallas_src>
from functools import partial

import jax
import jax.numpy as jnp
from jax.experimental import pallas as pl
from jax.experimental.pallas import tpu as pltpu


def _round_up(n, m):
    return ((n + m - 1) // m) * m


def _capsule_loss_kernel(xf_ref, lab_ref, img_ref, rec_ref, g_ref, out_ref,
                         *, batch, tb):
    i = pl.program_id(0)

    # Row-validity mask for the (possibly partial) last batch block.  Out-of-range
    # rows of an edge block contain undefined data and must not reach the sums.
    row_ids = jax.lax.broadcasted_iota(jnp.int32, (tb, 1), 0)
    valid = (i * tb + row_ids) < batch                      # (tb, 1) bool

    # --- margin loss term ---------------------------------------------------
    xf = xf_ref[...].astype(jnp.float32)                    # (tb, C*D)
    # Per-capsule sum of squares via the grouping matmul (column c selects capsule c).
    sq_sums = jnp.dot(xf * xf, g_ref[...],
                      preferred_element_type=jnp.float32,
                      precision=jax.lax.Precision.HIGHEST)  # (tb, C)
    v_c = jnp.sqrt(sq_sums)                                 # capsule lengths

    lab = lab_ref[...].astype(jnp.float32)                  # (tb, C)
    left = jnp.maximum(0.9 - v_c, 0.0)
    right = jnp.maximum(v_c - 0.1, 0.0)
    margin = jnp.where(valid, lab * left + 0.5 * (1.0 - lab) * right, 0.0)
    margin_sum = jnp.sum(jnp.sum(margin, axis=1, keepdims=True),
                         axis=0, keepdims=True)             # (1, 1)

    # --- reconstruction (sum-of-squared-error) term ---------------------------
    diff = rec_ref[...].astype(jnp.float32) - img_ref[...].astype(jnp.float32)
    diff = jnp.where(valid, diff, 0.0)                      # mask garbage rows
    sse = jnp.sum(jnp.sum(diff * diff, axis=1, keepdims=True),
                  axis=0, keepdims=True)                    # (1, 1)

    per_block = margin_sum + 0.0005 * sse                   # (1, 1), finite

    # Write the per-block partial sum into position [0,0] of this block's (8,128)
    # output tile (rest zeros) so the batch axis stays fully parallel.
    r = jax.lax.broadcasted_iota(jnp.int32, (1, 8, 128), 1)
    c = jax.lax.broadcasted_iota(jnp.int32, (1, 8, 128), 2)
    origin = ((r == 0) & (c == 0)).astype(jnp.float32)      # (1, 8, 128)
    out_ref[...] = origin * per_block


def capsule_loss(x, labels, images, reconstructions, *, tb=512):
    """x: (B, C, D) capsule outputs; labels: (B, C); images: (B, ...) with prod(...) == P;
    reconstructions: (B, P).  Returns the scalar CapsuleLoss."""
    B, C, D = x.shape
    F = C * D
    xf = x.reshape(B, F)                      # contiguous reshape: no HBM copy
    rec = reconstructions
    P = rec.shape[-1]
    img = images.reshape(B, -1)               # contiguous reshape: no HBM copy
    assert img.shape[1] == P

    # Batch tile: multiple of 8 sublanes, no larger than needed.
    tb = _round_up(max(8, min(int(tb), B)), 8)
    num_blocks = pl.cdiv(B, tb)

    # Grouping matrix G (F, C): G[c*D + j, c] = 1  ->  (x*x) @ G = per-capsule sums.
    g = jnp.repeat(jnp.eye(C, dtype=jnp.float32), D, axis=0)

    itemsize = lambda a: jnp.dtype(a.dtype).itemsize
    cost = pl.CostEstimate(
        flops=2 * B * F * C + 10 * B * (C + P),
        transcendentals=B * C,
        bytes_accessed=(itemsize(xf) * B * F + itemsize(labels) * B * C
                        + itemsize(img) * B * P + itemsize(rec) * B * P
                        + 4 * F * C + 4 * num_blocks * 8 * 128),
    )

    partials = pl.pallas_call(
        partial(_capsule_loss_kernel, batch=B, tb=tb),
        out_shape=jax.ShapeDtypeStruct((num_blocks, 8, 128), jnp.float32),
        grid=(num_blocks,),
        in_specs=[
            pl.BlockSpec((tb, F), lambda i: (i, 0)),   # x (flattened), batch-tiled
            pl.BlockSpec((tb, C), lambda i: (i, 0)),   # labels, unpadded last dim
            pl.BlockSpec((tb, P), lambda i: (i, 0)),   # images, native last dim
            pl.BlockSpec((tb, P), lambda i: (i, 0)),   # reconstructions, native last dim
            pl.BlockSpec((F, C), lambda i: (0, 0)),    # grouping matrix, VMEM-resident
        ],
        out_specs=pl.BlockSpec((1, 8, 128), lambda i: (i, 0, 0)),  # per-block partials
        compiler_params=pltpu.CompilerParams(
            dimension_semantics=("parallel",)),        # independent blocks -> megacore OK
        cost_estimate=cost,
    )(xf, labels, img, rec, g)

    return jnp.sum(partials) / B


def capsule_loss_reference(x, labels, images, reconstructions):
    """Pure-JAX transcription of the PyTorch CapsuleLoss.forward for verification."""
    B = x.shape[0]
    v_c = jnp.sqrt(jnp.sum(x ** 2, axis=2, keepdims=True))        # (B, C, 1)
    left = jnp.maximum(0.9 - v_c, 0.0).reshape(B, -1)
    right = jnp.maximum(v_c - 0.1, 0.0).reshape(B, -1)
    margin_loss = jnp.sum(labels * left + 0.5 * (1.0 - labels) * right)
    img = images.reshape(reconstructions.shape[0], -1)
    recon_loss = jnp.sum((reconstructions - img) ** 2)
    return (margin_loss + 0.0005 * recon_loss) / img.shape[0]


if __name__ == "__main__":
    key = jax.random.PRNGKey(0)
    kx, kl, ki, kr = jax.random.split(key, 4)

    B, C, D = 40, 10, 16          # batch, num_classes (capsules), capsule vector length
    H = W = 28                    # MNIST-sized reconstruction target

    x = jax.random.normal(kx, (B, C, D), jnp.float32)
    cls = jax.random.randint(kl, (B,), 0, C)
    labels = jax.nn.one_hot(cls, C, dtype=jnp.float32)
    images = jax.random.uniform(ki, (B, 1, H, W), jnp.float32)
    reconstructions = jax.random.uniform(kr, (B, H * W), jnp.float32)

    # tb=16 -> 3 batch blocks; last block is partial (8 valid rows) to exercise the
    # in-kernel edge-block masking and the per-block partial-sum outputs.
    loss = capsule_loss(x, labels, images, reconstructions, tb=16)
    jax.block_until_ready(loss)

    loss_ref = capsule_loss_reference(x, labels, images, reconstructions)
    assert loss.shape == ()
    assert jnp.allclose(loss, loss_ref, rtol=1e-4, atol=1e-4), (loss, loss_ref)

    print("KERNEL_OK")
</pallas_src>

<mosaic_0001>
module attributes {stable_mosaic.version = 11 : i64} {
  func.func @_capsule_loss_kernel(%arg0: i32, %arg1: memref<16x160xf32, #tpu.memory_space<vmem>>, %arg2: memref<16x10xf32, #tpu.memory_space<vmem>>, %arg3: memref<16x784xf32, #tpu.memory_space<vmem>>, %arg4: memref<16x784xf32, #tpu.memory_space<vmem>>, %arg5: memref<160x10xf32, #tpu.memory_space<vmem>>, %arg6: memref<1x8x128xf32, #tpu.memory_space<vmem>>) attributes {dimension_semantics = [#tpu.dimension_semantics<parallel>], iteration_bounds = array<i64: 3>, scalar_prefetch = 0 : i64, scratch_operands = 0 : i64, tpu.core_type = #tpu.core_type<tc>, window_params = [{transform_indices = @transform_0, window_bounds = array<i64: 16, 160>}, {transform_indices = @transform_1, window_bounds = array<i64: 16, 10>}, {transform_indices = @transform_2, window_bounds = array<i64: 16, 784>}, {transform_indices = @transform_3, window_bounds = array<i64: 16, 784>}, {pipeline_mode = #tpu.pipeline_mode<synchronous>, transform_indices = @transform_4, window_bounds = array<i64: 160, 10>}, {transform_indices = @transform_5, window_bounds = array<i64: 1, 8, 128>}]} {
    %0 = tpu.iota {dimensions = array<i32: 0>} : vector<16x1xi32>
    %c16_i32 = arith.constant 16 : i32
    %1 = arith.muli %arg0, %c16_i32 : i32
    %2 = vector.broadcast %1 : i32 to vector<16x1xi32>
    %3 = arith.addi %2, %0 : vector<16x1xi32>
    %c40_i32 = arith.constant 40 : i32
    %4 = vector.broadcast %c40_i32 : i32 to vector<16x1xi32>
    %5 = arith.cmpi slt, %3, %4 : vector<16x1xi32>
    %c0 = arith.constant 0 : index
    %c0_0 = arith.constant 0 : index
    %6 = vector.load %arg1[%c0, %c0_0] : memref<16x160xf32, #tpu.memory_space<vmem>>, vector<16x160xf32>
    %7 = arith.mulf %6, %6 : vector<16x160xf32>
    %c0_1 = arith.constant 0 : index
    %c0_2 = arith.constant 0 : index
    %8 = vector.load %arg5[%c0_1, %c0_2] : memref<160x10xf32, #tpu.memory_space<vmem>>, vector<160x10xf32>
    %cst = arith.constant dense<0.000000e+00> : vector<16x10xf32>
    %9 = tpu.matmul %7, %8, %cst {dimension_numbers = #tpu.dot_dimension_numbers<[1], [0], [0], [1], [0, 0, 1, 1], [], []>, precision = #tpu.contract_precision<fp32>} : vector<16x160xf32>, vector<160x10xf32>, vector<16x10xf32> -> vector<16x10xf32>
    %10 = math.sqrt %9 : vector<16x10xf32>
    %c0_3 = arith.constant 0 : index
    %c0_4 = arith.constant 0 : index
    %11 = vector.load %arg2[%c0_3, %c0_4] : memref<16x10xf32, #tpu.memory_space<vmem>>, vector<16x10xf32>
    %cst_5 = arith.constant 0.899999976 : f32
    %12 = vector.broadcast %cst_5 : f32 to vector<16x10xf32>
    %13 = arith.subf %12, %10 : vector<16x10xf32>
    %cst_6 = arith.constant 0.000000e+00 : f32
    %14 = vector.broadcast %cst_6 : f32 to vector<16x10xf32>
    %15 = arith.maximumf %13, %14 : vector<16x10xf32>
    %cst_7 = arith.constant 1.000000e-01 : f32
    %16 = vector.broadcast %cst_7 : f32 to vector<16x10xf32>
    %17 = arith.subf %10, %16 : vector<16x10xf32>
    %cst_8 = arith.constant 0.000000e+00 : f32
    %18 = vector.broadcast %cst_8 : f32 to vector<16x10xf32>
    %19 = arith.maximumf %17, %18 : vector<16x10xf32>
    %20 = arith.mulf %11, %15 : vector<16x10xf32>
    %cst_9 = arith.constant 1.000000e+00 : f32
    %21 = vector.broadcast %cst_9 : f32 to vector<16x10xf32>
    %22 = arith.subf %21, %11 : vector<16x10xf32>
    %cst_10 = arith.constant 5.000000e-01 : f32
    %23 = vector.broadcast %cst_10 : f32 to vector<16x10xf32>
    %24 = arith.mulf %23, %22 : vector<16x10xf32>
    %25 = arith.mulf %24, %19 : vector<16x10xf32>
    %26 = arith.addf %20, %25 : vector<16x10xf32>
    %cst_11 = arith.constant 0.000000e+00 : f32
    %27 = vector.shape_cast %5 : vector<16x1xi1> to vector<16x1xi1>
    %28 = vector.broadcast %27 : vector<16x1xi1> to vector<16x10xi1>
    %29 = vector.broadcast %cst_11 : f32 to vector<16x10xf32>
    %30 = arith.select %28, %26, %29 : vector<16x10xi1>, vector<16x10xf32>
    %cst_12 = arith.constant dense<0.000000e+00> : vector<16xf32>
    %31 = vector.multi_reduction <add>, %30, %cst_12 [1] : vector<16x10xf32> to vector<16xf32>
    %32 = vector.shape_cast %31 : vector<16xf32> to vector<16x1xf32>
    %cst_13 = arith.constant dense<0.000000e+00> : vector<1xf32>
    %33 = vector.multi_reduction <add>, %32, %cst_13 [0] : vector<16x1xf32> to vector<1xf32>
    %34 = vector.shape_cast %33 : vector<1xf32> to vector<1x1xf32>
    %c0_14 = arith.constant 0 : index
    %c0_15 = arith.constant 0 : index
    %35 = vector.load %arg4[%c0_14, %c0_15] : memref<16x784xf32, #tpu.memory_space<vmem>>, vector<16x784xf32>
    %c0_16 = arith.constant 0 : index
    %c0_17 = arith.constant 0 : index
    %36 = vector.load %arg3[%c0_16, %c0_17] : memref<16x784xf32, #tpu.memory_space<vmem>>, vector<16x784xf32>
    %37 = arith.subf %35, %36 : vector<16x784xf32>
    %cst_18 = arith.constant 0.000000e+00 : f32
    %38 = vector.shape_cast %5 : vector<16x1xi1> to vector<16x1xi1>
    %39 = vector.broadcast %38 : vector<16x1xi1> to vector<16x784xi1>
    %40 = vector.broadcast %cst_18 : f32 to vector<16x784xf32>
    %41 = arith.select %39, %37, %40 : vector<16x784xi1>, vector<16x784xf32>
    %42 = arith.mulf %41, %41 : vector<16x784xf32>
    %cst_19 = arith.constant dense<0.000000e+00> : vector<16xf32>
    %43 = vector.multi_reduction <add>, %42, %cst_19 [1] : vector<16x784xf32> to vector<16xf32>
    %44 = vector.shape_cast %43 : vector<16xf32> to vector<16x1xf32>
    %cst_20 = arith.constant dense<0.000000e+00> : vector<1xf32>
    %45 = vector.multi_reduction <add>, %44, %cst_20 [0] : vector<16x1xf32> to vector<1xf32>
    %46 = vector.shape_cast %45 : vector<1xf32> to vector<1x1xf32>
    %cst_21 = arith.constant 5.000000e-04 : f32
    %47 = vector.broadcast %cst_21 : f32 to vector<1x1xf32>
    %48 = arith.mulf %47, %46 : vector<1x1xf32>
    %49 = arith.addf %34, %48 : vector<1x1xf32>
    %50 = tpu.iota {dimensions = array<i32: 1>} : vector<1x8x128xi32>
    %51 = tpu.iota {dimensions = array<i32: 2>} : vector<1x8x128xi32>
    %c0_i32 = arith.constant 0 : i32
    %52 = vector.broadcast %c0_i32 : i32 to vector<1x8x128xi32>
    %53 = arith.cmpi eq, %50, %52 : vector<1x8x128xi32>
    %c0_i32_22 = arith.constant 0 : i32
    %54 = vector.broadcast %c0_i32_22 : i32 to vector<1x8x128xi32>
    %55 = arith.cmpi eq, %51, %54 : vector<1x8x128xi32>
    %56 = arith.andi %53, %55 : vector<1x8x128xi1>
    %57 = arith.extui %56 : vector<1x8x128xi1> to vector<1x8x128xi32>
    %58 = arith.sitofp %57 : vector<1x8x128xi32> to vector<1x8x128xf32>
    %59 = vector.shape_cast %49 : vector<1x1xf32> to vector<1x1x1xf32>
    %60 = vector.broadcast %59 : vector<1x1x1xf32> to vector<1x8x128xf32>
    %61 = arith.mulf %58, %60 : vector<1x8x128xf32>
    %c0_23 = arith.constant 0 : index
    %c0_24 = arith.constant 0 : index
    %c0_25 = arith.constant 0 : index
    %62 = vector.load %arg6[%c0_23, %c0_24, %c0_25] : memref<1x8x128xf32, #tpu.memory_space<vmem>>, vector<1x8x128xf32>
    tpu.vector_store %arg6[%c0_23, %c0_24, %c0_25], %61 {strides = array<i32>} : memref<1x8x128xf32, #tpu.memory_space<vmem>>, vector<1x8x128xf32>,
    return
  }
  func.func @transform_0(%arg0: i32) -> (i32, i32) {
    %c0_i32 = arith.constant 0 : i32
    %c0_i32_0 = arith.constant 0 : i32
    return %arg0, %c0_i32 : i32, i32
  }
  func.func @transform_1(%arg0: i32) -> (i32, i32) {
    %c0_i32 = arith.constant 0 : i32
    %c0_i32_0 = arith.constant 0 : i32
    return %arg0, %c0_i32 : i32, i32
  }
  func.func @transform_2(%arg0: i32) -> (i32, i32) {
    %c0_i32 = arith.constant 0 : i32
    %c0_i32_0 = arith.constant 0 : i32
    return %arg0, %c0_i32 : i32, i32
  }
  func.func @transform_3(%arg0: i32) -> (i32, i32) {
    %c0_i32 = arith.constant 0 : i32
    %c0_i32_0 = arith.constant 0 : i32
    return %arg0, %c0_i32 : i32, i32
  }
  func.func @transform_4(%arg0: i32) -> (i32, i32) {
    %c0_i32 = arith.constant 0 : i32
    %c0_i32_0 = arith.constant 0 : i32
    %c0_i32_1 = arith.constant 0 : i32
    return %c0_i32, %c0_i32_0 : i32, i32
  }
  func.func @transform_5(%arg0: i32) -> (i32, i32, i32) {
    %c0_i32 = arith.constant 0 : i32
    %c0_i32_0 = arith.constant 0 : i32
    %c0_i32_1 = arith.constant 0 : i32
    return %arg0, %c0_i32, %c0_i32_0 : i32, i32, i32
  }
}

</mosaic_0001>

<llo_original>
// kernel: tpu_custom_call.1
$region0: #{tpu_custom_call.1}
  #allocation0 [shape = 'u32[]', space=smem, size = 0x4, offset = 0x4, fixed_abs, tag = 'smem constant byte address 0x4 - core index']
  #allocation1 [shape = 'u32[72,128]{1,0:T(1,128)}', space=vmem, size = 0x9000, scoped, tag = 'internal scratch']
  %s0 = inlined_call_operand.vmem [shape: f32[40,160], index: 0, kind: input, shape index: {}]
  %s1 = inlined_call_operand.vmem [shape: f32[40,10], index: 1, kind: input, shape index: {}]
  %s2 = inlined_call_operand.hbm [shape: f32[40,784], index: 2, kind: input, shape index: {}]
  %s3 = inlined_call_operand.hbm [shape: f32[40,784], index: 3, kind: input, shape index: {}]
  %s4 = inlined_call_operand.vmem [shape: f32[160,10], index: 4, kind: input, shape index: {}]
  %s5 = inlined_call_operand.hbm [shape: f32[3,8,128], index: 5, kind: output, shape index: {}]
  %s6 = sld [smem:[#allocation0]]
  $region61: #{tpu_custom_call.1} parent=0
    _
  %s8 = ssub.s32 1, %s6
  %s9 = scalar_select 0, %s8, %s6
  $region1: #{tpu_custom_call.1} parent=0
    #allocation2 [shape = 'u8[114688]{0}', space=vmem, size = 0x1c000, scoped, tag = 'input window, operand 2']
    #allocation3 [shape = 's32[2]{0}', space=sflag, size = 0x8, scoped, tag = 'scoped memory for tpu_custom_call.1']
    #allocation4 [shape = 's32[2]{0}', space=sflag, size = 0x8, scoped, tag = 'scoped memory for tpu_custom_call.1']
    #allocation5 [shape = 'u8[114688]{0}', space=vmem, size = 0x1c000, scoped, tag = 'input window, operand 3']
    #allocation6 [shape = 's32[2]{0}', space=sflag, size = 0x8, scoped, tag = 'scoped memory for tpu_custom_call.1']
    #allocation7 [shape = 'u8[8192]{0}', space=vmem, size = 0x2000, scoped, tag = 'output window, operand 0']
    %10 = vsyncpa [#allocation3], 0
    %s11 = scalar_lea.sflag [#allocation3], 1
    %12 = vsyncpa %s11, 0
    %13 = vsyncpa [#allocation6], 0
    %s14 = scalar_lea.sflag [#allocation6], 1
    %15 = vsyncpa %s14, 0
    %16 = vsyncpa [#allocation4], 0
    %s17 = scalar_lea.sflag [#allocation4], 1
    %18 = vsyncpa %s17, 0
    loop: start=0, step=1, limit=5
    $region2: #{tpu_custom_call.1} parent=1 // loop_pre_header
      _
    $region3: #{tpu_custom_call.1} parent=1 // loop_header
      %s20 = sphi 0, %s24
      %p21 = scmp.ge.s32.totalorder %s20, 5
      %s30 = sphi 0, %s32
      %s33 = sphi 0, %s30
      %s34 = sphi 0, %s33
      %s50 = sphi 0, %s34
      %s56 = sphi 0, %s58
      %s59 = sphi 0, %s56
      %s60 = sphi 0, %s59
      %s76 = sphi 0, %s60
      %s82 = sphi 0, %s84
      %s85 = sphi 0, %s82
      %s86 = sphi 0, %s85
      %s102 = sphi 0, %s86
      %s108 = sphi 0, %s110
      %s111 = sphi 0, %s108
      %s112 = sphi 0, %s111
      %s128 = sphi 0, %s112
      %s132 = sphi 0, %s132
      %s134 = sphi 0, %s132
      %s135 = sphi 0, %s134
      %s149 = sphi 0, %s135
      %s155 = sphi 0, %s157
      %s158 = sphi 0, %s155
      %s159 = sphi 0, %s158
      %s175 = sphi 0, %s159
    $region4: #{tpu_custom_call.1} parent=1 // loop_header_branch
      %23 = sbr.rel (%p21) target = $region8
    $region5: #{tpu_custom_call.1} parent=1 // loop_body
      %s25 = ssub.s32 %s20, 1
      %s26 = ssub.s32 %s20, 2
      %s27 = sadd.s32 %s20, 1
      %s28 = ssub.s32 %s20, %s27
      %p29 = scmp.eq.s32.totalorder %s28, 0
      %s31 = sadd.s32 %s30, 1
      %s32 = scalar_select %p29, %s30, %s31
      %p35 = pneg %p29
      %p36 = scmp.eq.s32.totalorder %s20, 2
      %p37 = por %p35, %p36
      %p38 = scmp.ne.s32.totalorder %s30, %s33
      %p39 = scmp.eq.s32.totalorder %s20, 0
      %p40 = por %p38, %p39
      %p41 = scmp.ne.s32.totalorder %s30, %s33
      %p42 = scmp.eq.s32.totalorder %s25, 2
      %p43 = por %p41, %p42
      %p44 = scmp.ne.s32.totalorder %s33, %s34
      %p45 = scmp.eq.s32.totalorder %s25, 0
      %p46 = por %p44, %p45
      %p47 = scmp.ne.s32.totalorder %s33, %s34
      %p48 = scmp.eq.s32.totalorder %s26, 2
      %p49 = por %p47, %p48
      %p51 = scmp.ne.s32.totalorder %s34, %s50
      %p52 = scmp.eq.s32.totalorder %s26, 0
      %p53 = por %p51, %p52
      %s54 = ssub.s32 %s20, %s27
      %p55 = scmp.eq.s32.totalorder %s54, 0
      %s57 = sadd.s32 %s56, 1
      %s58 = scalar_select %p55, %s56, %s57
      %p61 = pneg %p55
      %p62 = scmp.eq.s32.totalorder %s20, 2
      %p63 = por %p61, %p62
      %p64 = scmp.ne.s32.totalorder %s56, %s59
      %p65 = scmp.eq.s32.totalorder %s20, 0
      %p66 = por %p64, %p65
      %p67 = scmp.ne.s32.totalorder %s56, %s59
      %p68 = scmp.eq.s32.totalorder %s25, 2
      %p69 = por %p67, %p68
      %p70 = scmp.ne.s32.totalorder %s59, %s60
      %p71 = scmp.eq.s32.totalorder %s25, 0
      %p72 = por %p70, %p71
      %p73 = scmp.ne.s32.totalorder %s59, %s60
      %p74 = scmp.eq.s32.totalorder %s26, 2
      %p75 = por %p73, %p74
      %p77 = scmp.ne.s32.totalorder %s60, %s76
      %p78 = scmp.eq.s32.totalorder %s26, 0
      %p79 = por %p77, %p78
      %s80 = ssub.s32 %s20, %s27
      %p81 = scmp.eq.s32.totalorder %s80, 0
      %s83 = sadd.s32 %s82, 1
      %s84 = scalar_select %p81, %s82, %s83
      %p87 = pneg %p81
      %p88 = scmp.eq.s32.totalorder %s20, 2
      %p89 = por %p87, %p88
      %p90 = scmp.ne.s32.totalorder %s82, %s85
      %p91 = scmp.eq.s32.totalorder %s20, 0
      %p92 = por %p90, %p91
      %p93 = scmp.ne.s32.totalorder %s82, %s85
      %p94 = scmp.eq.s32.totalorder %s25, 2
      %p95 = por %p93, %p94
      %p96 = scmp.ne.s32.totalorder %s85, %s86
      %p97 = scmp.eq.s32.totalorder %s25, 0
      %p98 = por %p96, %p97
      %p99 = scmp.ne.s32.totalorder %s85, %s86
      %p100 = scmp.eq.s32.totalorder %s26, 2
      %p101 = por %p99, %p100
      %p103 = scmp.ne.s32.totalorder %s86, %s102
      %p104 = scmp.eq.s32.totalorder %s26, 0
      %p105 = por %p103, %p104
      %s106 = ssub.s32 %s20, %s27
      %p107 = scmp.eq.s32.totalorder %s106, 0
      %s109 = sadd.s32 %s108, 1
      %s110 = scalar_select %p107, %s108, %s109
      %p113 = pneg %p107
      %p114 = scmp.eq.s32.totalorder %s20, 2
      %p115 = por %p113, %p114
      %p116 = scmp.ne.s32.totalorder %s108, %s111
      %p117 = scmp.eq.s32.totalorder %s20, 0
      %p118 = por %p116, %p117
      %p119 = scmp.ne.s32.totalorder %s108, %s111
      %p120 = scmp.eq.s32.totalorder %s25, 2
      %p121 = por %p119, %p120
      %p122 = scmp.ne.s32.totalorder %s111, %s112
      %p123 = scmp.eq.s32.totalorder %s25, 0
      %p124 = por %p122, %p123
      %p125 = scmp.ne.s32.totalorder %s111, %s112
      %p126 = scmp.eq.s32.totalorder %s26, 2
      %p127 = por %p125, %p126
      %p129 = scmp.ne.s32.totalorder %s112, %s128
      %p130 = scmp.eq.s32.totalorder %s26, 0
      %p131 = por %p129, %p130
      %s133 = sadd.s32 %s132, 1
      %p136 = scmp.eq.s32.totalorder %s20, 2
      %p137 = scmp.ne.s32.totalorder %s132, %s134
      %p138 = scmp.eq.s32.totalorder %s20, 0
      %p139 = por %p137, %p138
      %p140 = scmp.ne.s32.totalorder %s132, %s134
      %p141 = scmp.eq.s32.totalorder %s25, 2
      %p142 = por %p140, %p141
      %p143 = scmp.ne.s32.totalorder %s134, %s135
      %p144 = scmp.eq.s32.totalorder %s25, 0
      %p145 = por %p143, %p144
      %p146 = scmp.ne.s32.totalorder %s134, %s135
      %p147 = scmp.eq.s32.totalorder %s26, 2
      %p148 = por %p146, %p147
      %p150 = scmp.ne.s32.totalorder %s135, %s149
      %p151 = scmp.eq.s32.totalorder %s26, 0
      %p152 = por %p150, %p151
      %s153 = ssub.s32 %s20, %s27
      %p154 = scmp.eq.s32.totalorder %s153, 0
      %s156 = sadd.s32 %s155, 1
      %s157 = scalar_select %p154, %s155, %s156
      %p160 = pneg %p154
      %p161 = scmp.eq.s32.totalorder %s20, 2
      %p162 = por %p160, %p161
      %p163 = scmp.ne.s32.totalorder %s155, %s158
      %p164 = scmp.eq.s32.totalorder %s20, 0
      %p165 = por %p163, %p164
      %p166 = scmp.ne.s32.totalorder %s155, %s158
      %p167 = scmp.eq.s32.totalorder %s25, 2
      %p168 = por %p166, %p167
      %p169 = scmp.ne.s32.totalorder %s158, %s159
      %p170 = scmp.eq.s32.totalorder %s25, 0
      %p171 = por %p169, %p170
      %p172 = scmp.ne.s32.totalorder %s158, %s159
      %p173 = scmp.eq.s32.totalorder %s26, 2
      %p174 = por %p172, %p173
      %p176 = scmp.ne.s32.totalorder %s159, %s175
      %p177 = scmp.eq.s32.totalorder %s26, 0
      %p178 = por %p176, %p177
      %p179 = scmp.le.s32.totalorder 1, %s20
      %p180 = scmp.lt.s32.totalorder %s20, 4
      %p181 = pnand %p179, %p180
      %p182 = pneg %p181
      // Predicated region
      $region9: #{tpu_custom_call.1} parent=5 // pred_check
        _
      $region10: #{tpu_custom_call.1} parent=5 // pred_check_branch
        %184 = sbr.rel (%p181) target = $region12
      $region11: #{tpu_custom_call.1} parent=5 // pred_region
        %s185 = ssub.s32 %s20, 1
        // Predicated region
        $region13: #{tpu_custom_call.1} parent=11 // pred_check
          %p186 = pneg %p145
        $region14: #{tpu_custom_call.1} parent=11 // pred_check_branch
          %188 = sbr.rel (%p186) target = $region16
        $region15: #{tpu_custom_call.1} parent=11 // pred_region
          _
        $region16: #{tpu_custom_call.1} parent=11 // pred_fallthru
          _
      $region12: #{tpu_custom_call.1} parent=5 // pred_fallthru
        _
      %p189 = scmp.lt.s32.totalorder %s20, 3
      // Predicated region
      $region17: #{tpu_custom_call.1} parent=5 // pred_check
        %p190 = pneg %p189
      $region18: #{tpu_custom_call.1} parent=5 // pred_check_branch
        %192 = sbr.rel (%p190) target = $region20
      $region19: #{tpu_custom_call.1} parent=5 // pred_region
        // Predicated region
        $region21: #{tpu_custom_call.1} parent=19 // pred_check
          %p193 = pneg %p40
        $region22: #{tpu_custom_call.1} parent=19 // pred_check_branch
          %195 = sbr.rel (%p193) target = $region24
        $region23: #{tpu_custom_call.1} parent=19 // pred_region
          %s196 = smul.u32 2, %s20
          %s197 = ssub.s32 5, %s196
          %p198 = scmp.lt.s32.totalorder %s197, 2
          %s199 = scalar_select %p198, %s197, 2
          %s200 = smul.u32 8, %s199
          %s201 = smul.u32 %s200, 2
          %p202 = scmp.lt.s32.totalorder %s196, 4
          %s203 = scalar_select %p202, %s196, 4
          %s204 = smul.addr %s203, 2
          %s205 = smul.addr %s204, 8
          %s206 = scalar_lea.vmem %s0, %s205
          %s207 = smul.u32 2, %s20
          %s208 = ssub.s32 5, %s207
          %p209 = scmp.lt.s32.totalorder %s208, 2
          %s210 = scalar_select %p209, %s208, 2
          %s211 = smul.u32 8, %s210
          %s212 = smul.u32 %s211, 2
        $region24: #{tpu_custom_call.1} parent=19 // pred_fallthru
          _
        // Predicated region
        $region25: #{tpu_custom_call.1} parent=19 // pred_check
          %p213 = pneg %p66
        $region26: #{tpu_custom_call.1} parent=19 // pred_check_branch
          %215 = sbr.rel (%p213) target = $region28
        $region27: #{tpu_custom_call.1} parent=19 // pred_region
          %s216 = smul.u32 2, %s20
          %s217 = ssub.s32 5, %s216
          %p218 = scmp.lt.s32.totalorder %s217, 2
          %s219 = scalar_select %p218, %s217, 2
          %s220 = smul.u32 8, %s219
          %p221 = scmp.lt.s32.totalorder %s216, 4
          %s222 = scalar_select %p221, %s216, 4
          %s223 = smul.addr %s222, 8
          %s224 = scalar_lea.vmem %s1, %s223
          %s225 = smul.u32 2, %s20
          %s226 = ssub.s32 5, %s225
          %p227 = scmp.lt.s32.totalorder %s226, 2
          %s228 = scalar_select %p227, %s226, 2
          %s229 = smul.u32 8, %s228
        $region28: #{tpu_custom_call.1} parent=19 // pred_fallthru
          _
        // Predicated region
        $region29: #{tpu_custom_call.1} parent=19 // pred_check
          %p230 = pneg %p92
        $region30: #{tpu_custom_call.1} parent=19 // pred_check_branch
          %232 = sbr.rel (%p230) target = $region32
        $region31: #{tpu_custom_call.1} parent=19 // pred_region
          %s233 = sand.u32 %s82, 1
          %s234 = scalar_lea.sflag [#allocation3], %s233
          %s235 = sand.u32 %s82, 1
          %s236 = smul.addr %s235, 112
          %s237 = scalar_lea.vmem [#allocation2], %s236
          %s238 = smul.u32 2, %s20
          %s239 = ssub.s32 5, %s238
          %p240 = scmp.lt.s32.totalorder %s239, 2
          %s241 = scalar_select %p240, %s239, 2
          %s242 = smul.u32 8, %s241
          %s243 = smul.u32 %s242, 7
          %s244 = ssub.s32 112, %s243
          %s245 = sshll.u32 %s244, 4
          %246 = vsyncadd %s234, %s245
          %p247 = scmp.ne.s32.totalorder 0, %s243
          %s248 = smul.addr %s238, 7
          %s249 = smul.addr %s248, 8
          %s250 = scalar_lea.hbm %s2, %s249
          %s251 = smul.u32 56, %s241
          %s252 = sshll.u32 %s250, 4
          %s253 = int_to_ptr.hbm [resolvable:$true] %s252
          %s254 = sshll.u32 %s237, 4
          %s255 = int_to_ptr.vmem [resolvable:$true] %s254
          %s256 = sshll.u32 %s251, 4
          %260 = dma.hbm_to_vmem [thread:$0]  (%p247), %s253, %s256, %s255, %s234, 896, 896, 56
        $region32: #{tpu_custom_call.1} parent=19 // pred_fallthru
          _
        // Predicated region
        $region33: #{tpu_custom_call.1} parent=19 // pred_check
          %p261 = pneg %p118
        $region34: #{tpu_custom_call.1} parent=19 // pred_check_branch
          %263 = sbr.rel (%p261) target = $region36
        $region35: #{tpu_custom_call.1} parent=19 // pred_region
          %s264 = sand.u32 %s108, 1
          %s265 = scalar_lea.sflag [#allocation6], %s264
          %s266 = sand.u32 %s108, 1
          %s267 = smul.addr %s266, 112
          %s268 = scalar_lea.vmem [#allocation5], %s267
          %s269 = smul.u32 2, %s20
          %s270 = ssub.s32 5, %s269
          %p271 = scmp.lt.s32.totalorder %s270, 2
          %s272 = scalar_select %p271, %s270, 2
          %s273 = smul.u32 8, %s272
          %s274 = smul.u32 %s273, 7
          %s275 = ssub.s32 112, %s274
          %s276 = sshll.u32 %s275, 4
          %277 = vsyncadd %s265, %s276
          %p278 = scmp.ne.s32.totalorder 0, %s274
          %s279 = smul.addr %s269, 7
          %s280 = smul.addr %s279, 8
          %s281 = scalar_lea.hbm %s3, %s280
          %s282 = smul.u32 56, %s272
          %s283 = sshll.u32 %s281, 4
          %s284 = int_to_ptr.hbm [resolvable:$true] %s283
          %s285 = sshll.u32 %s268, 4
          %s286 = int_to_ptr.vmem [resolvable:$true] %s285
          %s287 = sshll.u32 %s282, 4
          %291 = dma.hbm_to_vmem [thread:$0]  (%p278), %s284, %s287, %s286, %s265, 896, 896, 56
        $region36: #{tpu_custom_call.1} parent=19 // pred_fallthru
          _
      $region20: #{tpu_custom_call.1} parent=5 // pred_fallthru
        _
      %p292 = scmp.le.s32.totalorder 1, %s20
      %p293 = scmp.lt.s32.totalorder %s20, 4
      %p294 = pnand %p292, %p293
      %p295 = pneg %p294
      // Predicated region
      $region37: #{tpu_custom_call.1} parent=5 // pred_check
        _
      $region38: #{tpu_custom_call.1} parent=5 // pred_check_branch
        %297 = sbr.rel (%p294) target = $region40
      $region39: #{tpu_custom_call.1} parent=5 // pred_region
        %s298 = ssub.s32 %s20, 1
        %s299 = sand.u32 %s85, 1
        %s300 = scalar_lea.sflag [#allocation3], %s299
        %s301 = sand.u32 %s85, 1
        %s302 = smul.addr %s301, 112
        %s303 = scalar_lea.vmem [#allocation2], %s302
        // Predicated region
        $region41: #{tpu_custom_call.1} parent=39 // pred_check
          %p304 = pneg %p98
        $region42: #{tpu_custom_call.1} parent=39 // pred_check_branch
          %306 = sbr.rel (%p304) target = $region44
        $region43: #{tpu_custom_call.1} parent=39 // pred_region
          %308 = dma.done %s300, 1792
        $region44: #{tpu_custom_call.1} parent=39 // pred_fallthru
          _
        %s309 = sand.u32 %s111, 1
        %s310 = scalar_lea.sflag [#allocation6], %s309
        %s311 = sand.u32 %s111, 1
        %s312 = smul.addr %s311, 112
        %s313 = scalar_lea.vmem [#allocation5], %s312
        // Predicated region
        $region45: #{tpu_custom_call.1} parent=39 // pred_check
          %p314 = pneg %p124
        $region46: #{tpu_custom_call.1} parent=39 // pred_check_branch
          %316 = sbr.rel (%p314) target = $region48
        $region47: #{tpu_custom_call.1} parent=39 // pred_region
          %318 = dma.done %s310, 1792
        $region48: #{tpu_custom_call.1} parent=39 // pred_fallthru
          _
        %s319 = smul.u32 2, %s25
        %s320 = ssub.s32 5, %s319
        %p321 = scmp.lt.s32.totalorder %s320, 2
        %s322 = scalar_select %p321, %s320, 2
        %s323 = smul.u32 8, %s322
        %s324 = smul.u32 %s323, 2
        %p325 = scmp.lt.s32.totalorder %s319, 4
        %s326 = scalar_select %p325, %s319, 4
        %s327 = smul.addr %s326, 2
        %s328 = smul.addr %s327, 8
        %s329 = scalar_lea.vmem %s0, %s328
        %p330 = pneg %p46
        %p331 = pneg %p43
        %s332 = smul.u32 2, %s25
        %s333 = ssub.s32 5, %s332
        %p334 = scmp.lt.s32.totalorder %s333, 2
        %s335 = scalar_select %p334, %s333, 2
        %s336 = smul.u32 8, %s335
        %p337 = scmp.lt.s32.totalorder %s332, 4
        %s338 = scalar_select %p337, %s332, 4
        %s339 = smul.addr %s338, 8
        %s340 = scalar_lea.vmem %s1, %s339
        %p341 = pneg %p72
        %p342 = pneg %p69
        %s343 = sand.u32 %s85, 1
        %s344 = scalar_lea.sflag [#allocation3], %s343
        %s345 = sand.u32 %s85, 1
        %s346 = smul.addr %s345, 112
        %s347 = scalar_lea.vmem [#allocation2], %s346
        %p348 = pneg %p98
        %p349 = pneg %p95
        %s350 = sand.u32 %s111, 1
        %s351 = scalar_lea.sflag [#allocation6], %s350
        %s352 = sand.u32 %s111, 1
        %s353 = smul.addr %s352, 112
        %s354 = scalar_lea.vmem [#allocation5], %s353
        %p355 = pneg %p124
        %p356 = pneg %p121
        %p357 = pneg %p145
        %p358 = pneg %p142
        %p359 = pneg %p171
        %p360 = pneg %p168
        %s361 = sand.u32 %s158, 1
        %s362 = scalar_lea.sflag [#allocation4], %s361
        %s363 = sand.u32 %s158, 1
        %s364 = smul.addr %s363, 8
        %s365 = scalar_lea.vmem [#allocation7], %s364
        %s366 = smul.u32 2, %s25
        %s367 = ssub.s32 5, %s366
        %p368 = scmp.lt.s32.totalorder %s367, 2
        %s369 = scalar_select %p368, %s367, 2
        %s370 = smul.u32 8, %s369
        %s371 = smul.u32 %s370, 2
        %p372 = scmp.lt.s32.totalorder %s366, 4
        %s373 = scalar_select %p372, %s366, 4
        %s374 = smul.addr %s373, 2
        %s375 = smul.addr %s374, 8
        %s376 = scalar_lea.vmem %s0, %s375
        %s377 = smul.u32 2, %s25
        %s378 = ssub.s32 5, %s377
        %p379 = scmp.lt.s32.totalorder %s378, 2
        %s380 = scalar_select %p379, %s378, 2
        %s381 = smul.u32 8, %s380
        %s382 = smul.u32 %s381, 2
        %s383 = smul.u32 2, %s25
        %s384 = ssub.s32 5, %s383
        %p385 = scmp.lt.s32.totalorder %s384, 2
        %s386 = scalar_select %p385, %s384, 2
        %s387 = smul.u32 8, %s386
        %p388 = scmp.lt.s32.totalorder %s383, 4
        %s389 = scalar_select %p388, %s383, 4
        %s390 = smul.addr %s389, 8
        %s391 = scalar_lea.vmem %s1, %s390
        %s392 = smul.u32 2, %s25
        %s393 = ssub.s32 5, %s392
        %p394 = scmp.lt.s32.totalorder %s393, 2
        %s395 = scalar_select %p394, %s393, 2
        %s396 = smul.u32 8, %s395
        %s397 = smul.u32 2, %s25
        %s398 = ssub.s32 5, %s397
        %p399 = scmp.lt.s32.totalorder %s398, 2
        %s400 = scalar_select %p399, %s398, 2
        %s401 = smul.u32 8, %s400
        %s402 = smul.u32 %s401, 7
        %s403 = smul.u32 2, %s25
        %s404 = ssub.s32 5, %s403
        %p405 = scmp.lt.s32.totalorder %s404, 2
        %s406 = scalar_select %p405, %s404, 2
        %s407 = smul.u32 8, %s406
        %s408 = smul.u32 %s407, 7
        %v409 = vlaneseq
        %v410 = vshrl.u32 %v409, 7
        %v411 = vadd.s32 %v410, 8
        %s412 = smul.u32 %s25, 16
        %v413 = vstv %s412
        %v414 = vadd.s32 %v413, %v410
        %v415 = vadd.s32 %v413, %v411
        %vm416 = vcmp.lt.s32.totalorder %v414, 40
        %vm417 = vcmp.lt.s32.totalorder %v415, 40
        %v418 = vld [vmem:[%s376] sm:$0xff]
        %v419 = vld [vmem:[%s376 + $0x8] sm:$0xff]
        %v420 = vld [vmem:[%s376 + $0x10] sm:$0xff]
        %v421 = vld [vmem:[%s376 + $0x18] sm:$0xff]
        %v422 = vmul.f32 %v418, %v418
        %v423 = vmul.f32 %v419, %v419
        %v424 = vmul.f32 %v420, %v420
        %v425 = vmul.f32 %v421, %v421
        %v426 = vld [vmem:[%s4] sm:$0xff]
        %v427 = vld [vmem:[%s4 + $0x8] sm:$0xff]
        %v428 = vld [vmem:[%s4 + $0x10] sm:$0xff]
        %v429 = vld [vmem:[%s4 + $0x18] sm:$0xff]
        %v430 = vld [vmem:[%s4 + $0x20] sm:$0xff]
        %v431 = vld [vmem:[%s4 + $0x28] sm:$0xff]
        %v432 = vld [vmem:[%s4 + $0x30] sm:$0xff]
        %v433 = vld [vmem:[%s4 + $0x38] sm:$0xff]
        %v434 = vld [vmem:[%s4 + $0x40] sm:$0xff]
        %v435 = vld [vmem:[%s4 + $0x48] sm:$0xff]
        %v436 = vld [vmem:[%s4 + $0x50] sm:$0xff]
        %v437 = vld [vmem:[%s4 + $0x58] sm:$0xff]
        %v438 = vld [vmem:[%s4 + $0x60] sm:$0xff]
        %v439 = vld [vmem:[%s4 + $0x68] sm:$0xff]
        %v440 = vld [vmem:[%s4 + $0x70] sm:$0xff]
        %v441 = vld [vmem:[%s4 + $0x78] sm:$0xff]
        %v442 = vld [vmem:[%s4 + $0x80] sm:$0xff]
        %v443 = vld [vmem:[%s4 + $0x88] sm:$0xff]
        %v444 = vld [vmem:[%s4 + $0x90] sm:$0xff]
        %v445 = vld [vmem:[%s4 + $0x98] sm:$0xff]
        %vm446 = vcmask 261120
        %v448 = vsel %vm446, %v423, 0
        %v451 = vsel %vm446, %v425, 0
        %v453 = vand.u32 %v441, 4294901760
        %454 = vmatpush.msra.mxu0 %v453
        %v455 = vand.u32 %v440, 4294901760
        %456 = vmatpush.msra.mxu0 %v455
        %v457 = vand.u32 %v439, 4294901760
        %458 = vmatpush.msra.mxu0 %v457
        %v459 = vand.u32 %v438, 4294901760
        %460 = vmatpush.msra.mxu0 %v459
        %v461 = vand.u32 %v437, 4294901760
        %462 = vmatpush.msra.mxu0 %v461
        %v463 = vand.u32 %v436, 4294901760
        %464 = vmatpush.msra.mxu0 %v463
        %v465 = vand.u32 %v435, 4294901760
        %466 = vmatpush.msra.mxu0 %v465
        %v467 = vand.u32 %v434, 4294901760
        %468 = vmatpush.msra.mxu0 %v467
        %v469 = vand.u32 %v433, 4294901760
        %470 = vmatpush.msra.mxu0 %v469
        %v471 = vand.u32 %v432, 4294901760
        %472 = vmatpush.msra.mxu0 %v471
        %v473 = vand.u32 %v431, 4294901760
        %474 = vmatpush.msra.mxu0 %v473
        %v475 = vand.u32 %v430, 4294901760
        %476 = vmatpush.msra.mxu0 %v475
        %v477 = vand.u32 %v429, 4294901760
        %478 = vmatpush.msra.mxu0 %v477
        %v479 = vand.u32 %v428, 4294901760
        %480 = vmatpush.msra.mxu0 %v479
        %v481 = vand.u32 %v427, 4294901760
        %482 = vmatpush.msra.mxu0 %v481
        %v483 = vand.u32 %v426, 4294901760
        %484 = vmatpush.msra.mxu0 %v483
        %v485 = vand.u32 %v422, 4294901760
        %v486 = vsub.f32 %v422, %v485
        %v487 = vand.u32 %v486, 4294901760
        %v488 = vsub.f32 %v486, %v487
        %v489 = vand.u32 %v488, 4294901760
        %490 = vmatmul.f32.gmra.mxu0 %v489
        %v491 = vpop.f32.mrf.mxu0
        %v492 = vadd.f32 0.0, %v491
        %v493 = vand.u32 %v424, 4294901760
        %v494 = vsub.f32 %v424, %v493
        %v495 = vand.u32 %v494, 4294901760
        %v496 = vsub.f32 %v494, %v495
        %v497 = vand.u32 %v496, 4294901760
        %498 = vmatmul.f32.gmra.mxu0 %v497
        %v499 = vpop.f32.mrf.mxu0
        %v500 = vadd.f32 0.0, %v499
        %501 = vdwg.mxu0
        %v502 = vand.u32 %v441, 4294901760
        %v503 = vsub.f32 %v441, %v502
        %v504 = vand.u32 %v503, 4294901760
        %v505 = vsub.f32 %v503, %v504
        %v506 = vand.u32 %v505, 4294901760
        %507 = vmatpush.msra.mxu0 %v506
        %v508 = vand.u32 %v440, 4294901760
        %v509 = vsub.f32 %v440, %v508
        %v510 = vand.u32 %v509, 4294901760
        %v511 = vsub.f32 %v509, %v510
        %v512 = vand.u32 %v511, 4294901760
        %513 = vmatpush.msra.mxu0 %v512
        %v514 = vand.u32 %v439, 4294901760
        %v515 = vsub.f32 %v439, %v514
        %v516 = vand.u32 %v515, 4294901760
        %v517 = vsub.f32 %v515, %v516
        %v518 = vand.u32 %v517, 4294901760
        %519 = vmatpush.msra.mxu0 %v518
        %v520 = vand.u32 %v438, 4294901760
        %v521 = vsub.f32 %v438, %v520
        %v522 = vand.u32 %v521, 4294901760
        %v523 = vsub.f32 %v521, %v522
        %v524 = vand.u32 %v523, 4294901760
        %525 = vmatpush.msra.mxu0 %v524
        %v526 = vand.u32 %v437, 4294901760
        %v527 = vsub.f32 %v437, %v526
        %v528 = vand.u32 %v527, 4294901760
        %v529 = vsub.f32 %v527, %v528
        %v530 = vand.u32 %v529, 4294901760
        %531 = vmatpush.msra.mxu0 %v530
        %v532 = vand.u32 %v436, 4294901760
        %v533 = vsub.f32 %v436, %v532
        %v534 = vand.u32 %v533, 4294901760
        %v535 = vsub.f32 %v533, %v534
        %v536 = vand.u32 %v535, 4294901760
        %537 = vmatpush.msra.mxu0 %v536
        %v538 = vand.u32 %v435, 4294901760
        %v539 = vsub.f32 %v435, %v538
        %v540 = vand.u32 %v539, 4294901760
        %v541 = vsub.f32 %v539, %v540
        %v542 = vand.u32 %v541, 4294901760
        %543 = vmatpush.msra.mxu0 %v542
        %v544 = vand.u32 %v434, 4294901760
        %v545 = vsub.f32 %v434, %v544
        %v546 = vand.u32 %v545, 4294901760
        %v547 = vsub.f32 %v545, %v546
        %v548 = vand.u32 %v547, 4294901760
        %549 = vmatpush.msra.mxu0 %v548
        %v550 = vand.u32 %v433, 4294901760
        %v551 = vsub.f32 %v433, %v550
        %v552 = vand.u32 %v551, 4294901760
        %v553 = vsub.f32 %v551, %v552
        %v554 = vand.u32 %v553, 4294901760
        %555 = vmatpush.msra.mxu0 %v554
        %v556 = vand.u32 %v432, 4294901760
        %v557 = vsub.f32 %v432, %v556
        %v558 = vand.u32 %v557, 4294901760
        %v559 = vsub.f32 %v557, %v558
        %v560 = vand.u32 %v559, 4294901760
        %561 = vmatpush.msra.mxu0 %v560
        %v562 = vand.u32 %v431, 4294901760
        %v563 = vsub.f32 %v431, %v562
        %v564 = vand.u32 %v563, 4294901760
        %v565 = vsub.f32 %v563, %v564
        %v566 = vand.u32 %v565, 4294901760
        %567 = vmatpush.msra.mxu0 %v566
        %v568 = vand.u32 %v430, 4294901760
        %v569 = vsub.f32 %v430, %v568
        %v570 = vand.u32 %v569, 4294901760
        %v571 = vsub.f32 %v569, %v570
        %v572 = vand.u32 %v571, 4294901760
        %573 = vmatpush.msra.mxu0 %v572
        %v574 = vand.u32 %v429, 4294901760
        %v575 = vsub.f32 %v429, %v574
        %v576 = vand.u32 %v575, 4294901760
        %v577 = vsub.f32 %v575, %v576
        %v578 = vand.u32 %v577, 4294901760
        %579 = vmatpush.msra.mxu0 %v578
        %v580 = vand.u32 %v428, 4294901760
        %v581 = vsub.f32 %v428, %v580
        %v582 = vand.u32 %v581, 4294901760
        %v583 = vsub.f32 %v581, %v582
        %v584 = vand.u32 %v583, 4294901760
        %585 = vmatpush.msra.mxu0 %v584
        %v586 = vand.u32 %v427, 4294901760
        %v587 = vsub.f32 %v427, %v586
        %v588 = vand.u32 %v587, 4294901760
        %v589 = vsub.f32 %v587, %v588
        %v590 = vand.u32 %v589, 4294901760
        %591 = vmatpush.msra.mxu0 %v590
        %v592 = vand.u32 %v426, 4294901760
        %v593 = vsub.f32 %v426, %v592
        %v594 = vand.u32 %v593, 4294901760
        %v595 = vsub.f32 %v593, %v594
        %v596 = vand.u32 %v595, 4294901760
        %597 = vmatpush.msra.mxu0 %v596
        %v598 = vand.u32 %v422, 4294901760
        %599 = vmatmul.f32.gmra.mxu0 %v598
        %v600 = vpop.f32.mrf.mxu0
        %v601 = vadd.f32 %v492, %v600
        %v602 = vand.u32 %v424, 4294901760
        %603 = vmatmul.f32.gmra.mxu0 %v602
        %v604 = vpop.f32.mrf.mxu0
        %v605 = vadd.f32 %v500, %v604
        %606 = vdwg.mxu0
        %v607 = vand.u32 %v441, 4294901760
        %v608 = vsub.f32 %v441, %v607
        %609 = vmatpush.msra.mxu0 %v608
        %v610 = vand.u32 %v440, 4294901760
        %v611 = vsub.f32 %v440, %v610
        %612 = vmatpush.msra.mxu0 %v611
        %v613 = vand.u32 %v439, 4294901760
        %v614 = vsub.f32 %v439, %v613
        %615 = vmatpush.msra.mxu0 %v614
        %v616 = vand.u32 %v438, 4294901760
        %v617 = vsub.f32 %v438, %v616
        %618 = vmatpush.msra.mxu0 %v617
        %v619 = vand.u32 %v437, 4294901760
        %v620 = vsub.f32 %v437, %v619
        %621 = vmatpush.msra.mxu0 %v620
        %v622 = vand.u32 %v436, 4294901760
        %v623 = vsub.f32 %v436, %v622
        %624 = vmatpush.msra.mxu0 %v623
        %v625 = vand.u32 %v435, 4294901760
        %v626 = vsub.f32 %v435, %v625
        %627 = vmatpush.msra.mxu0 %v626
        %v628 = vand.u32 %v434, 4294901760
        %v629 = vsub.f32 %v434, %v628
        %630 = vmatpush.msra.mxu0 %v629
        %v631 = vand.u32 %v433, 4294901760
        %v632 = vsub.f32 %v433, %v631
        %633 = vmatpush.msra.mxu0 %v632
        %v634 = vand.u32 %v432, 4294901760
        %v635 = vsub.f32 %v432, %v634
        %636 = vmatpush.msra.mxu0 %v635
        %v637 = vand.u32 %v431, 4294901760
        %v638 = vsub.f32 %v431, %v637
        %639 = vmatpush.msra.mxu0 %v638
        %v640 = vand.u32 %v430, 4294901760
        %v641 = vsub.f32 %v430, %v640
        %642 = vmatpush.msra.mxu0 %v641
        %v643 = vand.u32 %v429, 4294901760
        %v644 = vsub.f32 %v429, %v643
        %645 = vmatpush.msra.mxu0 %v644
        %v646 = vand.u32 %v428, 4294901760
        %v647 = vsub.f32 %v428, %v646
        %648 = vmatpush.msra.mxu0 %v647
        %v649 = vand.u32 %v427, 4294901760
        %v650 = vsub.f32 %v427, %v649
        %651 = vmatpush.msra.mxu0 %v650
        %v652 = vand.u32 %v426, 4294901760
        %v653 = vsub.f32 %v426, %v652
        %654 = vmatpush.msra.mxu0 %v653
        %v655 = vand.u32 %v422, 4294901760
        %v656 = vsub.f32 %v422, %v655
        %657 = vmatmul.f32.gmra.mxu0 %v656
        %v658 = vpop.f32.mrf.mxu0
        %v659 = vadd.f32 %v601, %v658
        %v660 = vand.u32 %v424, 4294901760
        %v661 = vsub.f32 %v424, %v660
        %662 = vmatmul.f32.gmra.mxu0 %v661
        %v663 = vpop.f32.mrf.mxu0
        %v664 = vadd.f32 %v605, %v663
        %665 = vdwg.mxu0
        %v666 = vand.u32 %v441, 4294901760
        %667 = vmatpush.msra.mxu0 %v666
        %v668 = vand.u32 %v440, 4294901760
        %669 = vmatpush.msra.mxu0 %v668
        %v670 = vand.u32 %v439, 4294901760
        %671 = vmatpush.msra.mxu0 %v670
        %v672 = vand.u32 %v438, 4294901760
        %673 = vmatpush.msra.mxu0 %v672
        %v674 = vand.u32 %v437, 4294901760
        %675 = vmatpush.msra.mxu0 %v674
        %v676 = vand.u32 %v436, 4294901760
        %677 = vmatpush.msra.mxu0 %v676
        %v678 = vand.u32 %v435, 4294901760
        %679 = vmatpush.msra.mxu0 %v678
        %v680 = vand.u32 %v434, 4294901760
        %681 = vmatpush.msra.mxu0 %v680
        %v682 = vand.u32 %v433, 4294901760
        %683 = vmatpush.msra.mxu0 %v682
        %v684 = vand.u32 %v432, 4294901760
        %685 = vmatpush.msra.mxu0 %v684
        %v686 = vand.u32 %v431, 4294901760
        %687 = vmatpush.msra.mxu0 %v686
        %v688 = vand.u32 %v430, 4294901760
        %689 = vmatpush.msra.mxu0 %v688
        %v690 = vand.u32 %v429, 4294901760
        %691 = vmatpush.msra.mxu0 %v690
        %v692 = vand.u32 %v428, 4294901760
        %693 = vmatpush.msra.mxu0 %v692
        %v694 = vand.u32 %v427, 4294901760
        %695 = vmatpush.msra.mxu0 %v694
        %v696 = vand.u32 %v426, 4294901760
        %697 = vmatpush.msra.mxu0 %v696
        %v698 = vand.u32 %v422, 4294901760
        %v699 = vsub.f32 %v422, %v698
        %v700 = vand.u32 %v699, 4294901760
        %701 = vmatmul.f32.gmra.mxu0 %v700
        %v702 = vpop.f32.mrf.mxu0
        %v703 = vadd.f32 %v659, %v702
        %v704 = vand.u32 %v424, 4294901760
        %v705 = vsub.f32 %v424, %v704
        %v706 = vand.u32 %v705, 4294901760
        %707 = vmatmul.f32.gmra.mxu0 %v706
        %v708 = vpop.f32.mrf.mxu0
        %v709 = vadd.f32 %v664, %v708
        %710 = vdwg.mxu0
        %v711 = vand.u32 %v441, 4294901760
        %v712 = vsub.f32 %v441, %v711
        %v713 = vand.u32 %v712, 4294901760
        %714 = vmatpush.msra.mxu0 %v713
        %v715 = vand.u32 %v440, 4294901760
        %v716 = vsub.f32 %v440, %v715
        %v717 = vand.u32 %v716, 4294901760
        %718 = vmatpush.msra.mxu0 %v717
        %v719 = vand.u32 %v439, 4294901760
        %v720 = vsub.f32 %v439, %v719
        %v721 = vand.u32 %v720, 4294901760
        %722 = vmatpush.msra.mxu0 %v721
        %v723 = vand.u32 %v438, 4294901760
        %v724 = vsub.f32 %v438, %v723
        %v725 = vand.u32 %v724, 4294901760
        %726 = vmatpush.msra.mxu0 %v725
        %v727 = vand.u32 %v437, 4294901760
        %v728 = vsub.f32 %v437, %v727
        %v729 = vand.u32 %v728, 4294901760
        %730 = vmatpush.msra.mxu0 %v729
        %v731 = vand.u32 %v436, 4294901760
        %v732 = vsub.f32 %v436, %v731
        %v733 = vand.u32 %v732, 4294901760
        %734 = vmatpush.msra.mxu0 %v733
        %v735 = vand.u32 %v435, 4294901760
        %v736 = vsub.f32 %v435, %v735
        %v737 = vand.u32 %v736, 4294901760
        %738 = vmatpush.msra.mxu0 %v737
        %v739 = vand.u32 %v434, 4294901760
        %v740 = vsub.f32 %v434, %v739
        %v741 = vand.u32 %v740, 4294901760
        %742 = vmatpush.msra.mxu0 %v741
        %v743 = vand.u32 %v433, 4294901760
        %v744 = vsub.f32 %v433, %v743
        %v745 = vand.u32 %v744, 4294901760
        %746 = vmatpush.msra.mxu0 %v745
        %v747 = vand.u32 %v432, 4294901760
        %v748 = vsub.f32 %v432, %v747
        %v749 = vand.u32 %v748, 4294901760
        %750 = vmatpush.msra.mxu0 %v749
        %v751 = vand.u32 %v431, 4294901760
        %v752 = vsub.f32 %v431, %v751
        %v753 = vand.u32 %v752, 4294901760
        %754 = vmatpush.msra.mxu0 %v753
        %v755 = vand.u32 %v430, 4294901760
        %v756 = vsub.f32 %v430, %v755
        %v757 = vand.u32 %v756, 4294901760
        %758 = vmatpush.msra.mxu0 %v757
        %v759 = vand.u32 %v429, 4294901760
        %v760 = vsub.f32 %v429, %v759
        %v761 = vand.u32 %v760, 4294901760
        %762 = vmatpush.msra.mxu0 %v761
        %v763 = vand.u32 %v428, 4294901760
        %v764 = vsub.f32 %v428, %v763
        %v765 = vand.u32 %v764, 4294901760
        %766 = vmatpush.msra.mxu0 %v765
        %v767 = vand.u32 %v427, 4294901760
        %v768 = vsub.f32 %v427, %v767
        %v769 = vand.u32 %v768, 4294901760
        %770 = vmatpush.msra.mxu0 %v769
        %v771 = vand.u32 %v426, 4294901760
        %v772 = vsub.f32 %v426, %v771
        %v773 = vand.u32 %v772, 4294901760
        %774 = vmatpush.msra.mxu0 %v773
        %v775 = vand.u32 %v422, 4294901760
        %776 = vmatmul.f32.gmra.mxu0 %v775
        %v777 = vpop.f32.mrf.mxu0
        %v778 = vadd.f32 %v703, %v777
        %v779 = vand.u32 %v424, 4294901760
        %780 = vmatmul.f32.gmra.mxu0 %v779
        %v781 = vpop.f32.mrf.mxu0
        %v782 = vadd.f32 %v709, %v781
        %783 = vdwg.mxu0
        %v784 = vand.u32 %v441, 4294901760
        %785 = vmatpush.msra.mxu0 %v784
        %v786 = vand.u32 %v440, 4294901760
        %787 = vmatpush.msra.mxu0 %v786
        %v788 = vand.u32 %v439, 4294901760
        %789 = vmatpush.msra.mxu0 %v788
        %v790 = vand.u32 %v438, 4294901760
        %791 = vmatpush.msra.mxu0 %v790
        %v792 = vand.u32 %v437, 4294901760
        %793 = vmatpush.msra.mxu0 %v792
        %v794 = vand.u32 %v436, 4294901760
        %795 = vmatpush.msra.mxu0 %v794
        %v796 = vand.u32 %v435, 4294901760
        %797 = vmatpush.msra.mxu0 %v796
        %v798 = vand.u32 %v434, 4294901760
        %799 = vmatpush.msra.mxu0 %v798
        %v800 = vand.u32 %v433, 4294901760
        %801 = vmatpush.msra.mxu0 %v800
        %v802 = vand.u32 %v432, 4294901760
        %803 = vmatpush.msra.mxu0 %v802
        %v804 = vand.u32 %v431, 4294901760
        %805 = vmatpush.msra.mxu0 %v804
        %v806 = vand.u32 %v430, 4294901760
        %807 = vmatpush.msra.mxu0 %v806
        %v808 = vand.u32 %v429, 4294901760
        %809 = vmatpush.msra.mxu0 %v808
        %v810 = vand.u32 %v428, 4294901760
        %811 = vmatpush.msra.mxu0 %v810
        %v812 = vand.u32 %v427, 4294901760
        %813 = vmatpush.msra.mxu0 %v812
        %v814 = vand.u32 %v426, 4294901760
        %815 = vmatpush.msra.mxu0 %v814
        %v816 = vand.u32 %v422, 4294901760
        %817 = vmatmul.f32.gmra.mxu0 %v816
        %v818 = vpop.f32.mrf.mxu0
        %v819 = vadd.f32 %v778, %v818
        %v820 = vand.u32 %v424, 4294901760
        %821 = vmatmul.f32.gmra.mxu0 %v820
        %v822 = vpop.f32.mrf.mxu0
        %v823 = vadd.f32 %v782, %v822
        %824 = vdwg.mxu0
        %825 = vmatpush.msra.mxu0 0.0
        %826 = vmatpush.msra.mxu0 0.0
        %827 = vmatpush.msra.mxu0 0.0
        %828 = vmatpush.msra.mxu0 0.0
        %829 = vmatpush.msra.mxu0 0.0
        %830 = vmatpush.msra.mxu0 0.0
        %831 = vmatpush.msra.mxu0 0.0
        %832 = vmatpush.msra.mxu0 0.0
        %833 = vmatpush.msra.mxu0 0.0
        %834 = vmatpush.msra.mxu0 0.0
        %835 = vmatpush.msra.mxu0 0.0
        %836 = vmatpush.msra.mxu0 0.0
        %v837 = vand.u32 %v445, 4294901760
        %838 = vmatpush.msra.mxu0 %v837
        %v839 = vand.u32 %v444, 4294901760
        %840 = vmatpush.msra.mxu0 %v839
        %v841 = vand.u32 %v443, 4294901760
        %842 = vmatpush.msra.mxu0 %v841
        %v843 = vand.u32 %v442, 4294901760
        %844 = vmatpush.msra.mxu0 %v843
        %v845 = vand.u32 %v448, 4294901760
        %v846 = vsub.f32 %v448, %v845
        %v847 = vand.u32 %v846, 4294901760
        %v848 = vsub.f32 %v846, %v847
        %v849 = vand.u32 %v848, 4294901760
        %850 = vmatmul.f32.gmra.mxu0 %v849
        %v851 = vpop.f32.mrf.mxu0
        %v852 = vadd.f32 %v819, %v851
        %v853 = vand.u32 %v451, 4294901760
        %v854 = vsub.f32 %v451, %v853
        %v855 = vand.u32 %v854, 4294901760
        %v856 = vsub.f32 %v854, %v855
        %v857 = vand.u32 %v856, 4294901760
        %858 = vmatmul.f32.gmra.mxu0 %v857
        %v859 = vpop.f32.mrf.mxu0
        %v860 = vadd.f32 %v823, %v859
        %861 = vdwg.mxu0
        %862 = vmatpush.msra.mxu0 0.0
        %863 = vmatpush.msra.mxu0 0.0
        %864 = vmatpush.msra.mxu0 0.0
        %865 = vmatpush.msra.mxu0 0.0
        %866 = vmatpush.msra.mxu0 0.0
        %867 = vmatpush.msra.mxu0 0.0
        %868 = vmatpush.msra.mxu0 0.0
        %869 = vmatpush.msra.mxu0 0.0
        %870 = vmatpush.msra.mxu0 0.0
        %871 = vmatpush.msra.mxu0 0.0
        %872 = vmatpush.msra.mxu0 0.0
        %873 = vmatpush.msra.mxu0 0.0
        %v874 = vand.u32 %v445, 4294901760
        %v875 = vsub.f32 %v445, %v874
        %v876 = vand.u32 %v875, 4294901760
        %v877 = vsub.f32 %v875, %v876
        %v878 = vand.u32 %v877, 4294901760
        %879 = vmatpush.msra.mxu0 %v878
        %v880 = vand.u32 %v444, 4294901760
        %v881 = vsub.f32 %v444, %v880
        %v882 = vand.u32 %v881, 4294901760
        %v883 = vsub.f32 %v881, %v882
        %v884 = vand.u32 %v883, 4294901760
        %885 = vmatpush.msra.mxu0 %v884
        %v886 = vand.u32 %v443, 4294901760
        %v887 = vsub.f32 %v443, %v886
        %v888 = vand.u32 %v887, 4294901760
        %v889 = vsub.f32 %v887, %v888
        %v890 = vand.u32 %v889, 4294901760
        %891 = vmatpush.msra.mxu0 %v890
        %v892 = vand.u32 %v442, 4294901760
        %v893 = vsub.f32 %v442, %v892
        %v894 = vand.u32 %v893, 4294901760
        %v895 = vsub.f32 %v893, %v894
        %v896 = vand.u32 %v895, 4294901760
        %897 = vmatpush.msra.mxu0 %v896
        %v898 = vand.u32 %v448, 4294901760
        %899 = vmatmul.f32.gmra.mxu0 %v898
        %v900 = vpop.f32.mrf.mxu0
        %v901 = vadd.f32 %v852, %v900
        %v902 = vand.u32 %v451, 4294901760
        %903 = vmatmul.f32.gmra.mxu0 %v902
        %v904 = vpop.f32.mrf.mxu0
        %v905 = vadd.f32 %v860, %v904
        %906 = vdwg.mxu0
        %907 = vmatpush.msra.mxu0 0.0
        %908 = vmatpush.msra.mxu0 0.0
        %909 = vmatpush.msra.mxu0 0.0
        %910 = vmatpush.msra.mxu0 0.0
        %911 = vmatpush.msra.mxu0 0.0
        %912 = vmatpush.msra.mxu0 0.0
        %913 = vmatpush.msra.mxu0 0.0
        %914 = vmatpush.msra.mxu0 0.0
        %915 = vmatpush.msra.mxu0 0.0
        %916 = vmatpush.msra.mxu0 0.0
        %917 = vmatpush.msra.mxu0 0.0
        %918 = vmatpush.msra.mxu0 0.0
        %v919 = vand.u32 %v445, 4294901760
        %v920 = vsub.f32 %v445, %v919
        %921 = vmatpush.msra.mxu0 %v920
        %v922 = vand.u32 %v444, 4294901760
        %v923 = vsub.f32 %v444, %v922
        %924 = vmatpush.msra.mxu0 %v923
        %v925 = vand.u32 %v443, 4294901760
        %v926 = vsub.f32 %v443, %v925
        %927 = vmatpush.msra.mxu0 %v926
        %v928 = vand.u32 %v442, 4294901760
        %v929 = vsub.f32 %v442, %v928
        %930 = vmatpush.msra.mxu0 %v929
        %v931 = vand.u32 %v448, 4294901760
        %v932 = vsub.f32 %v448, %v931
        %933 = vmatmul.f32.gmra.mxu0 %v932
        %v934 = vpop.f32.mrf.mxu0
        %v935 = vadd.f32 %v901, %v934
        %v936 = vand.u32 %v451, 4294901760
        %v937 = vsub.f32 %v451, %v936
        %938 = vmatmul.f32.gmra.mxu0 %v937
        %v939 = vpop.f32.mrf.mxu0
        %v940 = vadd.f32 %v905, %v939
        %941 = vdwg.mxu0
        %942 = vmatpush.msra.mxu0 0.0
        %943 = vmatpush.msra.mxu0 0.0
        %944 = vmatpush.msra.mxu0 0.0
        %945 = vmatpush.msra.mxu0 0.0
        %946 = vmatpush.msra.mxu0 0.0
        %947 = vmatpush.msra.mxu0 0.0
        %948 = vmatpush.msra.mxu0 0.0
        %949 = vmatpush.msra.mxu0 0.0
        %950 = vmatpush.msra.mxu0 0.0
        %951 = vmatpush.msra.mxu0 0.0
        %952 = vmatpush.msra.mxu0 0.0
        %953 = vmatpush.msra.mxu0 0.0
        %v954 = vand.u32 %v445, 4294901760
        %955 = vmatpush.msra.mxu0 %v954
        %v956 = vand.u32 %v444, 4294901760
        %957 = vmatpush.msra.mxu0 %v956
        %v958 = vand.u32 %v443, 4294901760
        %959 = vmatpush.msra.mxu0 %v958
        %v960 = vand.u32 %v442, 4294901760
        %961 = vmatpush.msra.mxu0 %v960
        %v962 = vand.u32 %v448, 4294901760
        %v963 = vsub.f32 %v448, %v962
        %v964 = vand.u32 %v963, 4294901760
        %965 = vmatmul.f32.gmra.mxu0 %v964
        %v966 = vpop.f32.mrf.mxu0
        %v967 = vadd.f32 %v935, %v966
        %v968 = vand.u32 %v451, 4294901760
        %v969 = vsub.f32 %v451, %v968
        %v970 = vand.u32 %v969, 4294901760
        %971 = vmatmul.f32.gmra.mxu0 %v970
        %v972 = vpop.f32.mrf.mxu0
        %v973 = vadd.f32 %v940, %v972
        %974 = vdwg.mxu0
        %975 = vmatpush.msra.mxu0 0.0
        %976 = vmatpush.msra.mxu0 0.0
        %977 = vmatpush.msra.mxu0 0.0
        %978 = vmatpush.msra.mxu0 0.0
        %979 = vmatpush.msra.mxu0 0.0
        %980 = vmatpush.msra.mxu0 0.0
        %981 = vmatpush.msra.mxu0 0.0
        %982 = vmatpush.msra.mxu0 0.0
        %983 = vmatpush.msra.mxu0 0.0
        %984 = vmatpush.msra.mxu0 0.0
        %985 = vmatpush.msra.mxu0 0.0
        %986 = vmatpush.msra.mxu0 0.0
        %v987 = vand.u32 %v445, 4294901760
        %v988 = vsub.f32 %v445, %v987
        %v989 = vand.u32 %v988, 4294901760
        %990 = vmatpush.msra.mxu0 %v989
        %v991 = vand.u32 %v444, 4294901760
        %v992 = vsub.f32 %v444, %v991
        %v993 = vand.u32 %v992, 4294901760
        %994 = vmatpush.msra.mxu0 %v993
        %v995 = vand.u32 %v443, 4294901760
        %v996 = vsub.f32 %v443, %v995
        %v997 = vand.u32 %v996, 4294901760
        %998 = vmatpush.msra.mxu0 %v997
        %v999 = vand.u32 %v442, 4294901760
        %v1000 = vsub.f32 %v442, %v999
        %v1001 = vand.u32 %v1000, 4294901760
        %1002 = vmatpush.msra.mxu0 %v1001
        %v1003 = vand.u32 %v448, 4294901760
        %1004 = vmatmul.f32.gmra.mxu0 %v1003
        %v1005 = vpop.f32.mrf.mxu0
        %v1006 = vadd.f32 %v967, %v1005
        %v1007 = vand.u32 %v451, 4294901760
        %1008 = vmatmul.f32.gmra.mxu0 %v1007
        %v1009 = vpop.f32.mrf.mxu0
        %v1010 = vadd.f32 %v973, %v1009
        %1011 = vdwg.mxu0
        %1012 = vmatpush.msra.mxu0 0.0
        %1013 = vmatpush.msra.mxu0 0.0
        %1014 = vmatpush.msra.mxu0 0.0
        %1015 = vmatpush.msra.mxu0 0.0
        %1016 = vmatpush.msra.mxu0 0.0
        %1017 = vmatpush.msra.mxu0 0.0
        %1018 = vmatpush.msra.mxu0 0.0
        %1019 = vmatpush.msra.mxu0 0.0
        %1020 = vmatpush.msra.mxu0 0.0
        %1021 = vmatpush.msra.mxu0 0.0
        %1022 = vmatpush.msra.mxu0 0.0
        %1023 = vmatpush.msra.mxu0 0.0
        %v1024 = vand.u32 %v445, 4294901760
        %1025 = vmatpush.msra.mxu0 %v1024
        %v1026 = vand.u32 %v444, 4294901760
        %1027 = vmatpush.msra.mxu0 %v1026
        %v1028 = vand.u32 %v443, 4294901760
        %1029 = vmatpush.msra.mxu0 %v1028
        %v1030 = vand.u32 %v442, 4294901760
        %1031 = vmatpush.msra.mxu0 %v1030
        %v1032 = vand.u32 %v448, 4294901760
        %1033 = vmatmul.f32.gmra.mxu0 %v1032
        %v1034 = vpop.f32.mrf.mxu0
        %v1035 = vadd.f32 %v1006, %v1034
        %v1036 = vand.u32 %v451, 4294901760
        %1037 = vmatmul.f32.gmra.mxu0 %v1036
        %v1038 = vpop.f32.mrf.mxu0
        %v1039 = vadd.f32 %v1010, %v1038
        %1040 = vdwg.mxu0
        %v1041 = vrsqrt.pop %v1035
        %v1042 = vmul.f32 %v1041, %v1035
        %v1043 = vmul.f32 %v1042, %v1041
        %v1044 = vmul.f32 0.5, %v1043
        %v1045 = vsub.f32 1.5, %v1044
        %v1046 = vmul.f32 %v1041, %v1045
        %v1047 = vmul.f32 %v1035, %v1046
        %vm1048 = vcmp.eq.f32.partialorder %v1035, inf
        %v1049 = vsel %vm1048, %v1035, %v1047
        %vm1050 = vcmp.eq.f32.partialorder %v1035, 0.0
        %v1051 = vand.u32 %v1035, 2147483648
        %v1052 = vsel %vm1050, %v1051, %v1049
        %v1053 = vrsqrt.pop %v1039
        %v1054 = vmul.f32 %v1053, %v1039
        %v1055 = vmul.f32 %v1054, %v1053
        %v1056 = vmul.f32 0.5, %v1055
        %v1057 = vsub.f32 1.5, %v1056
        %v1058 = vmul.f32 %v1053, %v1057
        %v1059 = vmul.f32 %v1039, %v1058
        %vm1060 = vcmp.eq.f32.partialorder %v1039, inf
        %v1061 = vsel %vm1060, %v1039, %v1059
        %vm1062 = vcmp.eq.f32.partialorder %v1039, 0.0
        %v1063 = vand.u32 %v1039, 2147483648
        %v1064 = vsel %vm1062, %v1063, %v1061
        %v1065 = vld [vmem:[%s391] sm:$0xff]
        %v1066 = vld [vmem:[%s391 + $0x8] sm:$0xff]
        %v1067 = vsub.f32 0.9, %v1052
        %v1068 = vsub.f32 0.9, %v1064
        %v1069 = vmax.f32 %v1067, 0.0
        %v1070 = vmax.f32 %v1068, 0.0
        %v1071 = vsub.f32 %v1052, 0.1
        %v1072 = vsub.f32 %v1064, 0.1
        %v1073 = vmax.f32 %v1071, 0.0
        %v1074 = vmax.f32 %v1072, 0.0
        %v1075 = vmul.f32 %v1065, %v1069
        %v1076 = vmul.f32 %v1066, %v1070
        %v1077 = vsub.f32 1.0, %v1065
        %v1078 = vsub.f32 1.0, %v1066
        %v1079 = vmul.f32 %v1077, 0.5
        %v1080 = vmul.f32 %v1078, 0.5
        %v1081 = vmul.f32 %v1079, %v1073
        %v1082 = vmul.f32 %v1080, %v1074
        %v1083 = vadd.f32 %v1075, %v1081
        %v1084 = vadd.f32 %v1076, %v1082
        %v1085 = vsel %vm416, 1, 0
        %v1086 = vsel %vm417, 1, 0
        %vm1087 = vcmp.eq.s32.totalorder %v1085, 1
        %vm1088 = vcmp.eq.s32.totalorder %v1086, 1
        %v1089 = vsel %vm1087, %v1083, 0.0
        %v1090 = vsel %vm1088, %v1084, 0.0
        %vm1091 = vcmask 80896
        %v1092 = vsel %vm1091, %v1089, 0.0
        %1093 = vadd.xlane.f32.xlu0 %v1092
        %v1094 = vpop.xlane.xlu0 %1093
        %v1095 = vsel %vm1091, %v1090, 0.0
        %1096 = vadd.xlane.f32.xlu0 %v1095
        %v1097 = vpop.xlane.xlu0 %1096
        %v1098 = vadd.f32 %v1094, %v1097
        %v1099 = vrot.slane %v1098, 4
        %v1100 = vadd.f32 %v1098, %v1099
        %v1101 = vrot.slane %v1100, 2
        %v1102 = vadd.f32 %v1100, %v1101
        %v1103 = vrot.slane %v1102, 1
        %v1104 = vadd.f32 %v1102, %v1103
        %v1105 = vld [vmem:[%s313] sm:$0xff]
        %v1106 = vld [vmem:[%s313 + $0x8] sm:$0xff]
        %v1107 = vld [vmem:[%s313 + $0x10] sm:$0xff]
        %v1108 = vld [vmem:[%s313 + $0x18] sm:$0xff]
        %v1109 = vld [vmem:[%s313 + $0x20] sm:$0xff]
        %v1110 = vld [vmem:[%s313 + $0x28] sm:$0xff]
        %v1111 = vld [vmem:[%s313 + $0x30] sm:$0xff]
        %v1112 = vld [vmem:[%s313 + $0x38] sm:$0xff]
        %v1113 = vld [vmem:[%s313 + $0x40] sm:$0xff]
        %v1114 = vld [vmem:[%s313 + $0x48] sm:$0xff]
        %v1115 = vld [vmem:[%s313 + $0x50] sm:$0xff]
        %v1116 = vld [vmem:[%s313 + $0x58] sm:$0xff]
        %v1117 = vld [vmem:[%s313 + $0x60] sm:$0xff]
        %v1118 = vld [vmem:[%s313 + $0x68] sm:$0xff]
        %v1119 = vld [vmem:[%s303] sm:$0xff]
        %v1120 = vld [vmem:[%s303 + $0x8] sm:$0xff]
        %v1121 = vld [vmem:[%s303 + $0x10] sm:$0xff]
        %v1122 = vld [vmem:[%s303 + $0x18] sm:$0xff]
        %v1123 = vld [vmem:[%s303 + $0x20] sm:$0xff]
        %v1124 = vld [vmem:[%s303 + $0x28] sm:$0xff]
        %v1125 = vld [vmem:[%s303 + $0x30] sm:$0xff]
        %v1126 = vld [vmem:[%s303 + $0x38] sm:$0xff]
        %v1127 = vld [vmem:[%s303 + $0x40] sm:$0xff]
        %v1128 = vld [vmem:[%s303 + $0x48] sm:$0xff]
        %v1129 = vld [vmem:[%s303 + $0x50] sm:$0xff]
        %v1130 = vld [vmem:[%s303 + $0x58] sm:$0xff]
        %v1131 = vld [vmem:[%s303 + $0x60] sm:$0xff]
        %v1132 = vld [vmem:[%s303 + $0x68] sm:$0xff]
        %v1133 = vsub.f32 %v1105, %v1119
        %v1134 = vsub.f32 %v1106, %v1120
        %v1135 = vsub.f32 %v1107, %v1121
        %v1136 = vsub.f32 %v1108, %v1122
        %v1137 = vsub.f32 %v1109, %v1123
        %v1138 = vsub.f32 %v1110, %v1124
        %v1139 = vsub.f32 %v1111, %v1125
        %v1140 = vsub.f32 %v1112, %v1126
        %v1141 = vsub.f32 %v1113, %v1127
        %v1142 = vsub.f32 %v1114, %v1128
        %v1143 = vsub.f32 %v1115, %v1129
        %v1144 = vsub.f32 %v1116, %v1130
        %v1145 = vsub.f32 %v1117, %v1131
        %v1146 = vsub.f32 %v1118, %v1132
        %v1147 = vsel %vm1087, %v1133, 0.0
        %v1148 = vsel %vm1087, %v1134, 0.0
        %v1149 = vsel %vm1087, %v1135, 0.0
        %v1150 = vsel %vm1087, %v1136, 0.0
        %v1151 = vsel %vm1087, %v1137, 0.0
        %v1152 = vsel %vm1087, %v1138, 0.0
        %v1153 = vsel %vm1087, %v1139, 0.0
        %v1154 = vsel %vm1088, %v1140, 0.0
        %v1155 = vsel %vm1088, %v1141, 0.0
        %v1156 = vsel %vm1088, %v1142, 0.0
        %v1157 = vsel %vm1088, %v1143, 0.0
        %v1158 = vsel %vm1088, %v1144, 0.0
        %v1159 = vsel %vm1088, %v1145, 0.0
        %v1160 = vsel %vm1088, %v1146, 0.0
        %v1161 = vmul.f32 %v1147, %v1147
        %v1162 = vmul.f32 %v1148, %v1148
        %v1163 = vmul.f32 %v1149, %v1149
        %v1164 = vmul.f32 %v1150, %v1150
        %v1165 = vmul.f32 %v1151, %v1151
        %v1166 = vmul.f32 %v1152, %v1152
        %v1167 = vmul.f32 %v1153, %v1153
        %v1168 = vmul.f32 %v1154, %v1154
        %v1169 = vmul.f32 %v1155, %v1155
        %v1170 = vmul.f32 %v1156, %v1156
        %v1171 = vmul.f32 %v1157, %v1157
        %v1172 = vmul.f32 %v1158, %v1158
        %v1173 = vmul.f32 %v1159, %v1159
        %v1174 = vmul.f32 %v1160, %v1160
        %v1175 = vadd.f32 %v1161, %v1162
        %v1176 = vadd.f32 %v1175, %v1163
        %v1177 = vadd.f32 %v1176, %v1164
        %v1178 = vadd.f32 %v1177, %v1165
        %v1179 = vadd.f32 %v1178, %v1166
        %vm1180 = vcmask 130048
        %v1181 = vsel %vm1180, %v1167, 0.0
        %v1182 = vadd.f32 %v1179, %v1181
        %1183 = vadd.xlane.f32.xlu0 %v1182
        %v1184 = vpop.xlane.xlu0 %1183
        %v1185 = vadd.f32 %v1168, %v1169
        %v1186 = vadd.f32 %v1185, %v1170
        %v1187 = vadd.f32 %v1186, %v1171
        %v1188 = vadd.f32 %v1187, %v1172
        %v1189 = vadd.f32 %v1188, %v1173
        %v1190 = vsel %vm1180, %v1174, 0.0
        %v1191 = vadd.f32 %v1189, %v1190
        %1192 = vadd.xlane.f32.xlu0 %v1191
        %v1193 = vpop.xlane.xlu0 %1192
        %v1194 = vadd.f32 %v1184, %v1193
        %v1195 = vrot.slane %v1194, 4
        %v1196 = vadd.f32 %v1194, %v1195
        %v1197 = vrot.slane %v1196, 2
        %v1198 = vadd.f32 %v1196, %v1197
        %v1199 = vrot.slane %v1198, 1
        %v1200 = vadd.f32 %v1198, %v1199
        %v1201 = vmul.f32 %v1200, 0.0005
        %v1202 = vadd.f32 %v1104, %v1201
        %v1203 = vlaneseq
        %v1204 = vand.u32 %v1203, 127
        %vm1205 = vcmp.eq.s32.totalorder %v410, 0
        %vm1206 = vcmp.eq.s32.totalorder %v1204, 0
        %vm1207 = vmand %vm1205, %vm1206
        %v1208 = vsel %vm1207, 1, 0
        %v1209 = vcvt.s32.f32 %v1208
        %v1210 = vmul.f32 %v1209, %v1202
        %1211 = vst [vmem:[%s365] sm:$0xff] %v1210
        %s1212 = sand.u32 %s158, 1
        %s1213 = scalar_lea.sflag [#allocation4], %s1212
        %s1214 = sand.u32 %s158, 1
        %s1215 = smul.addr %s1214, 8
        %s1216 = scalar_lea.vmem [#allocation7], %s1215
        // Predicated region
        $region49: #{tpu_custom_call.1} parent=39 // pred_check
          %p1217 = pneg %p168
        $region50: #{tpu_custom_call.1} parent=39 // pred_check_branch
          %1219 = sbr.rel (%p1217) target = $region52
        $region51: #{tpu_custom_call.1} parent=39 // pred_region
          %1221 = vsyncadd %s1213, 0
          %s1222 = smul.addr %s25, 8
          %s1223 = scalar_lea.hbm %s5, %s1222
          %s1225 = sshll.u32 %s1216, 4
          %s1226 = int_to_ptr.vmem [resolvable:$true] %s1225
          %s1227 = sshll.u32 %s1223, 4
          %s1228 = int_to_ptr.hbm [resolvable:$true] %s1227
          %1230 = dma.vmem_to_hbm [thread:$0]  %s1226, 128, %s1228, %s1213
        $region52: #{tpu_custom_call.1} parent=39 // pred_fallthru
          _
      $region40: #{tpu_custom_call.1} parent=5 // pred_fallthru
        _
      %p1231 = scmp.le.s32.totalorder 2, %s20
      // Predicated region
      $region53: #{tpu_custom_call.1} parent=5 // pred_check
        %p1232 = pneg %p1231
      $region54: #{tpu_custom_call.1} parent=5 // pred_check_branch
        %1234 = sbr.rel (%p1232) target = $region56
      $region55: #{tpu_custom_call.1} parent=5 // pred_region
        %s1235 = ssub.s32 %s20, 2
        // Predicated region
        $region57: #{tpu_custom_call.1} parent=55 // pred_check
          %p1236 = pneg %p174
        $region58: #{tpu_custom_call.1} parent=55 // pred_check_branch
          %1238 = sbr.rel (%p1236) target = $region60
        $region59: #{tpu_custom_call.1} parent=55 // pred_region
          %s1239 = sand.u32 %s159, 1
          %s1240 = scalar_lea.sflag [#allocation4], %s1239
          %s1241 = sand.u32 %s159, 1
          %s1242 = smul.addr %s1241, 8
          %s1243 = scalar_lea.vmem [#allocation7], %s1242
          %1245 = dma.done %s1240, 128
        $region60: #{tpu_custom_call.1} parent=55 // pred_fallthru
          _
      $region56: #{tpu_custom_call.1} parent=5 // pred_fallthru
        _
    $region6: #{tpu_custom_call.1} parent=1 // loop_footer
      %s24 = sadd.s32 1, %s20
    $region7: #{tpu_custom_call.1} parent=1 // loop_footer_branch
      %19 = sbr.rel target = $region3
    $region8: #{tpu_custom_call.1} parent=1 // loop_exit
      _
    %1246 = vsyncpa [#allocation3], 1
    %s1247 = scalar_lea.sflag [#allocation3], 1
    %1248 = vsyncpa %s1247, 1
    %1249 = vsyncpa [#allocation6], 1
    %s1250 = scalar_lea.sflag [#allocation6], 1
    %1251 = vsyncpa %s1250, 1
    %1252 = vsyncpa [#allocation4], 1
    %s1253 = scalar_lea.sflag [#allocation4], 1
    %1254 = vsyncpa %s1253, 1

</llo_original>
